<compile_context>
chip_gen: v6e
topology: v6e:2x2x1
jax: 0.10.0
libtpu: 0.0.40
codegen_flags: <defaults>
</compile_context>

<pallas_src>
import functools

import jax
import jax.numpy as jnp
import numpy as np
from jax.experimental import pallas as pl
from jax.experimental.pallas import tpu as pltpu


# ------------------------------ fused kernel --------------------------------
# One grid step processes BH "row-pair groups"; each group of shape (2, W/2, 2C)
# yields W/2 merged rows of 4C channels.  LayerNorm + reduction run on the whole
# (BH*W/2, 4C) slab in one pass.

def patch_merging_kernel(x_ref, g_ref, b_ref, w_ref, wb_ref, o_ref, *, eps):
    t = x_ref[...]                                        # (BH, 2, W2, 2C)
    # channel concat: [even-row pair | odd-row pair] == [x0,x1,x2,x3] of the torch code
    merged = jnp.concatenate([t[:, 0], t[:, 1]], axis=-1)  # (BH, W2, 4C)
    bh, w2, c4 = merged.shape
    m2 = merged.reshape(bh * w2, c4)                       # (rows, 4C)

    # LayerNorm(4C)
    mean = jnp.mean(m2, axis=-1, keepdims=True)
    var = jnp.mean(jnp.square(m2 - mean), axis=-1, keepdims=True)
    y = (m2 - mean) * jax.lax.rsqrt(var + eps) * g_ref[0] + b_ref[0]

    # reduction: Linear(4C -> 2C), f32 accumulate
    o = jnp.dot(y, w_ref[...], preferred_element_type=jnp.float32) + wb_ref[0]
    o_ref[...] = o.reshape(bh, w2, -1).astype(o_ref.dtype)


# ------------------------------- wrapper -------------------------------------

def _largest_divisor_le(n, cap):
    cap = max(1, min(n, cap))
    for d in range(cap, 0, -1):
        if n % d == 0:
            return d
    return 1


def patch_merging_forward(x, params, *, resolution, row_block_target=512, eps=1e-5):
    H, W = resolution
    B, N, C = x.shape
    assert N == H * W and H % 2 == 0 and W % 2 == 0
    H2, W2 = H // 2, W // 2
    C4, C2 = 4 * C, 2 * C

    # Free (metadata-only) reshape: group adjacent spatial rows in pairs, and fold
    # adjacent columns into 2C channels.  Row-major layout makes this contiguous.
    #   xv[g, rp, j, :] = [ x[b, 2*i+rp, 2*j, :], x[b, 2*i+rp, 2*j+1, :] ]
    G = B * H2
    xv = x.reshape(G, 2, W2, C2)

    # Pick the rows-per-step block: big enough to fill the MXU / amortize step
    # overhead, exact divisor of G (no ragged tail), and >=2 grid steps when
    # possible so v7x's two TensorCores both get work.
    max_bh = max(1, row_block_target // max(1, W2))
    if G >= 2:
        max_bh = min(max_bh, max(1, G // 2))
    BH = _largest_divisor_le(G, max_bh)
    grid = (G // BH,)

    out = pl.pallas_call(
        functools.partial(patch_merging_kernel, eps=eps),
        out_shape=jax.ShapeDtypeStruct((G, W2, C2), x.dtype),
        grid=grid,
        in_specs=[
            pl.BlockSpec((BH, 2, W2, C2), lambda i: (i, 0, 0, 0)),   # input row-pair groups
            pl.BlockSpec((1, C4), lambda i: (0, 0)),                 # LayerNorm gamma
            pl.BlockSpec((1, C4), lambda i: (0, 0)),                 # LayerNorm beta
            pl.BlockSpec((C4, C2), lambda i: (0, 0)),                # reduction weight (4C,2C)
            pl.BlockSpec((1, C2), lambda i: (0, 0)),                 # reduction bias
        ],
        out_specs=pl.BlockSpec((BH, W2, C2), lambda i: (i, 0, 0)),
        compiler_params=pltpu.CompilerParams(dimension_semantics=("parallel",)),
    )(xv, params["ln_g"], params["ln_b"], params["red_w"], params["red_b"])

    return out.reshape(B, H2 * W2, C2)


# ----------------------------- pure-JAX reference ----------------------------

def patch_merging_reference(x, params, *, resolution, eps=1e-5):
    H, W = resolution
    B, N, C = x.shape
    xr = x.reshape(B, H, W, C)
    x0 = xr[:, 0::2, 0::2, :]
    x1 = xr[:, 0::2, 1::2, :]
    x2 = xr[:, 1::2, 0::2, :]
    x3 = xr[:, 1::2, 1::2, :]
    xm = jnp.concatenate([x0, x1, x2, x3], axis=-1).reshape(B, (H // 2) * (W // 2), 4 * C)
    mean = jnp.mean(xm, axis=-1, keepdims=True)
    var = jnp.mean((xm - mean) ** 2, axis=-1, keepdims=True)
    y = (xm - mean) * jax.lax.rsqrt(var + eps) * params["ln_g"][0] + params["ln_b"][0]
    return y @ params["red_w"] + params["red_b"][0]


# ------------------------------------ main ------------------------------------

def make_params(key, C):
    k1, k2, k3, k4 = jax.random.split(key, 4)
    C4, C2 = 4 * C, 2 * C
    std = 0.02
    return {
        "ln_g": 1.0 + 0.1 * jax.random.normal(k1, (1, C4), jnp.float32),
        "ln_b": 0.1 * jax.random.normal(k2, (1, C4), jnp.float32),
        "red_w": jax.random.normal(k3, (C4, C2), jnp.float32) * std,   # stored as (in, out)
        "red_b": jax.random.normal(k4, (1, C2), jnp.float32) * std,
    }


if __name__ == "__main__":
    jax.config.update("jax_default_matmul_precision", "highest")

    # PatchMerging(resolution=(16, 16), dim=32):  x is [B, H*W, C] = [2, 256, 32]
    B, H, W, C = 2, 16, 16, 32
    N = H * W

    key = jax.random.PRNGKey(0)
    kx, kp = jax.random.split(key)
    x = jax.random.normal(kx, (B, N, C), jnp.float32)
    params = make_params(kp, C)

    out = patch_merging_forward(x, params, resolution=(H, W))
    out = jax.block_until_ready(out)

    ref = jax.block_until_ready(patch_merging_reference(x, params, resolution=(H, W)))
    np.testing.assert_allclose(np.asarray(out), np.asarray(ref), rtol=1e-4, atol=1e-4)

    print("KERNEL_OK")
</pallas_src>

<mosaic_0001>
module attributes {stable_mosaic.version = 11 : i64} {
  func.func @patch_merging_kernel(%arg0: i32, %arg1: memref<8x2x8x64xf32, #tpu.memory_space<vmem>>, %arg2: memref<1x128xf32, #tpu.memory_space<vmem>>, %arg3: memref<1x128xf32, #tpu.memory_space<vmem>>, %arg4: memref<128x64xf32, #tpu.memory_space<vmem>>, %arg5: memref<1x64xf32, #tpu.memory_space<vmem>>, %arg6: memref<8x8x64xf32, #tpu.memory_space<vmem>>) attributes {dimension_semantics = [#tpu.dimension_semantics<parallel>], iteration_bounds = array<i64: 2>, scalar_prefetch = 0 : i64, scratch_operands = 0 : i64, tpu.core_type = #tpu.core_type<tc>, window_params = [{transform_indices = @transform_0, window_bounds = array<i64: 8, 2, 8, 64>}, {pipeline_mode = #tpu.pipeline_mode<synchronous>, transform_indices = @transform_1, window_bounds = array<i64: 1, 128>}, {pipeline_mode = #tpu.pipeline_mode<synchronous>, transform_indices = @transform_2, window_bounds = array<i64: 1, 128>}, {pipeline_mode = #tpu.pipeline_mode<synchronous>, transform_indices = @transform_3, window_bounds = array<i64: 128, 64>}, {pipeline_mode = #tpu.pipeline_mode<synchronous>, transform_indices = @transform_4, window_bounds = array<i64: 1, 64>}, {transform_indices = @transform_5, window_bounds = array<i64: 8, 8, 64>}]} {
    %c0 = arith.constant 0 : index
    %c0_0 = arith.constant 0 : index
    %c0_1 = arith.constant 0 : index
    %c0_2 = arith.constant 0 : index
    %0 = vector.load %arg1[%c0, %c0_0, %c0_1, %c0_2] : memref<8x2x8x64xf32, #tpu.memory_space<vmem>>, vector<8x2x8x64xf32>
    %1 = vector.extract_strided_slice %0 {offsets = [0, 0, 0, 0], sizes = [8, 1, 8, 64], strides = [1, 1, 1, 1]} : vector<8x2x8x64xf32> to vector<8x1x8x64xf32>
    %2 = vector.shape_cast %1 : vector<8x1x8x64xf32> to vector<8x8x64xf32>
    %3 = vector.extract_strided_slice %0 {offsets = [0, 1, 0, 0], sizes = [8, 1, 8, 64], strides = [1, 1, 1, 1]} : vector<8x2x8x64xf32> to vector<8x1x8x64xf32>
    %4 = vector.shape_cast %3 : vector<8x1x8x64xf32> to vector<8x8x64xf32>
    %5 = tpu.concatenate %2, %4 in 2 : vector<8x8x64xf32>, vector<8x8x64xf32> -> vector<8x8x128xf32>
    %6 = vector.shape_cast %5 : vector<8x8x128xf32> to vector<64x128xf32>
    %cst = arith.constant dense<0.000000e+00> : vector<64xf32>
    %7 = vector.multi_reduction <add>, %6, %cst [1] : vector<64x128xf32> to vector<64xf32>
    %8 = vector.shape_cast %7 : vector<64xf32> to vector<64x1xf32>
    %cst_3 = arith.constant 1.280000e+02 : f32
    %9 = vector.broadcast %cst_3 : f32 to vector<64x1xf32>
    %10 = arith.divf %8, %9 : vector<64x1xf32>
    %11 = vector.broadcast %10 : vector<64x1xf32> to vector<64x128xf32>
    %12 = arith.subf %6, %11 : vector<64x128xf32>
    %13 = arith.mulf %12, %12 : vector<64x128xf32>
    %cst_4 = arith.constant dense<0.000000e+00> : vector<64xf32>
    %14 = vector.multi_reduction <add>, %13, %cst_4 [1] : vector<64x128xf32> to vector<64xf32>
    %15 = vector.shape_cast %14 : vector<64xf32> to vector<64x1xf32>
    %cst_5 = arith.constant 1.280000e+02 : f32
    %16 = vector.broadcast %cst_5 : f32 to vector<64x1xf32>
    %17 = arith.divf %15, %16 : vector<64x1xf32>
    %18 = vector.broadcast %10 : vector<64x1xf32> to vector<64x128xf32>
    %19 = arith.subf %6, %18 : vector<64x128xf32>
    %cst_6 = arith.constant 9.99999974E-6 : f32
    %20 = vector.broadcast %cst_6 : f32 to vector<64x1xf32>
    %21 = arith.addf %17, %20 : vector<64x1xf32>
    %22 = math.rsqrt %21 : vector<64x1xf32>
    %23 = vector.broadcast %22 : vector<64x1xf32> to vector<64x128xf32>
    %24 = arith.mulf %19, %23 : vector<64x128xf32>
    %c0_7 = arith.constant 0 : index
    %c0_8 = arith.constant 0 : index
    %25 = vector.load %arg2[%c0_7, %c0_8] : memref<1x128xf32, #tpu.memory_space<vmem>>, vector<1x128xf32>
    %26 = vector.shape_cast %25 : vector<1x128xf32> to vector<128xf32>
    %27 = vector.shape_cast %26 : vector<128xf32> to vector<1x128xf32>
    %28 = vector.broadcast %27 : vector<1x128xf32> to vector<64x128xf32>
    %29 = arith.mulf %24, %28 : vector<64x128xf32>
    %c0_9 = arith.constant 0 : index
    %c0_10 = arith.constant 0 : index
    %30 = vector.load %arg3[%c0_9, %c0_10] : memref<1x128xf32, #tpu.memory_space<vmem>>, vector<1x128xf32>
    %31 = vector.shape_cast %30 : vector<1x128xf32> to vector<128xf32>
    %32 = vector.shape_cast %31 : vector<128xf32> to vector<1x128xf32>
    %33 = vector.broadcast %32 : vector<1x128xf32> to vector<64x128xf32>
    %34 = arith.addf %29, %33 : vector<64x128xf32>
    %c0_11 = arith.constant 0 : index
    %c0_12 = arith.constant 0 : index
    %35 = vector.load %arg4[%c0_11, %c0_12] : memref<128x64xf32, #tpu.memory_space<vmem>>, vector<128x64xf32>
    %cst_13 = arith.constant dense<0.000000e+00> : vector<64x64xf32>
    %36 = tpu.matmul %34, %35, %cst_13 {dimension_numbers = #tpu.dot_dimension_numbers<[1], [0], [0], [1], [0, 0, 1, 1], [], []>, precision = #tpu.contract_precision<fp32>} : vector<64x128xf32>, vector<128x64xf32>, vector<64x64xf32> -> vector<64x64xf32>
    %c0_14 = arith.constant 0 : index
    %c0_15 = arith.constant 0 : index
    %37 = vector.load %arg5[%c0_14, %c0_15] : memref<1x64xf32, #tpu.memory_space<vmem>>, vector<1x64xf32>
    %38 = vector.shape_cast %37 : vector<1x64xf32> to vector<64xf32>
    %39 = vector.shape_cast %38 : vector<64xf32> to vector<1x64xf32>
    %40 = vector.broadcast %39 : vector<1x64xf32> to vector<64x64xf32>
    %41 = arith.addf %36, %40 : vector<64x64xf32>
    %42 = vector.shape_cast %41 : vector<64x64xf32> to vector<8x8x64xf32>
    %c0_16 = arith.constant 0 : index
    %c0_17 = arith.constant 0 : index
    %c0_18 = arith.constant 0 : index
    %43 = vector.load %arg6[%c0_16, %c0_17, %c0_18] : memref<8x8x64xf32, #tpu.memory_space<vmem>>, vector<8x8x64xf32>
    tpu.vector_store %arg6[%c0_16, %c0_17, %c0_18], %42 {strides = array<i32>} : memref<8x8x64xf32, #tpu.memory_space<vmem>>, vector<8x8x64xf32>,
    return
  }
  func.func @transform_0(%arg0: i32) -> (i32, i32, i32, i32) {
    %c0_i32 = arith.constant 0 : i32
    %c0_i32_0 = arith.constant 0 : i32
    %c0_i32_1 = arith.constant 0 : i32
    %c0_i32_2 = arith.constant 0 : i32
    return %arg0, %c0_i32, %c0_i32_0, %c0_i32_1 : i32, i32, i32, i32
  }
  func.func @transform_1(%arg0: i32) -> (i32, i32) {
    %c0_i32 = arith.constant 0 : i32
    %c0_i32_0 = arith.constant 0 : i32
    %c0_i32_1 = arith.constant 0 : i32
    return %c0_i32, %c0_i32_0 : i32, i32
  }
  func.func @transform_2(%arg0: i32) -> (i32, i32) {
    %c0_i32 = arith.constant 0 : i32
    %c0_i32_0 = arith.constant 0 : i32
    %c0_i32_1 = arith.constant 0 : i32
    return %c0_i32, %c0_i32_0 : i32, i32
  }
  func.func @transform_3(%arg0: i32) -> (i32, i32) {
    %c0_i32 = arith.constant 0 : i32
    %c0_i32_0 = arith.constant 0 : i32
    %c0_i32_1 = arith.constant 0 : i32
    return %c0_i32, %c0_i32_0 : i32, i32
  }
  func.func @transform_4(%arg0: i32) -> (i32, i32) {
    %c0_i32 = arith.constant 0 : i32
    %c0_i32_0 = arith.constant 0 : i32
    %c0_i32_1 = arith.constant 0 : i32
    return %c0_i32, %c0_i32_0 : i32, i32
  }
  func.func @transform_5(%arg0: i32) -> (i32, i32, i32) {
    %c0_i32 = arith.constant 0 : i32
    %c0_i32_0 = arith.constant 0 : i32
    %c0_i32_1 = arith.constant 0 : i32
    return %arg0, %c0_i32, %c0_i32_0 : i32, i32, i32
  }
}

</mosaic_0001>

<llo_original>
// kernel: tpu_custom_call.1
$region0: #{tpu_custom_call.1}
  #allocation0 [shape = 'u32[]', space=smem, size = 0x4, offset = 0x4, fixed_abs, tag = 'smem constant byte address 0x4 - core index']
  #allocation1 [shape = 'u32[144,128]{1,0:T(1,128)}', space=vmem, size = 0x12000, scoped, tag = 'internal scratch']
  %s0 = inlined_call_operand.hbm [shape: f32[16,2,8,64], index: 0, kind: input, shape index: {}]
  %s1 = inlined_call_operand.vmem [shape: f32[1,128], index: 1, kind: input, shape index: {}]
  %s2 = inlined_call_operand.vmem [shape: f32[1,128], index: 2, kind: input, shape index: {}]
  %s3 = inlined_call_operand.vmem [shape: f32[128,64], index: 3, kind: input, shape index: {}]
  %s4 = inlined_call_operand.vmem [shape: f32[1,64], index: 4, kind: input, shape index: {}]
  %s5 = inlined_call_operand.hbm [shape: f32[16,8,64], index: 5, kind: output, shape index: {}]
  %s6 = sld [smem:[#allocation0]]
  $region57: #{tpu_custom_call.1} parent=0
    _
  %s8 = ssub.s32 1, %s6
  %s9 = scalar_select 0, %s8, %s6
  $region1: #{tpu_custom_call.1} parent=0
    #allocation2 [shape = 'u8[131072]{0}', space=vmem, size = 0x20000, scoped, tag = 'input window, operand 0']
    #allocation3 [shape = 's32[2]{0}', space=sflag, size = 0x8, scoped, tag = 'scoped memory for tpu_custom_call.1']
    #allocation4 [shape = 's32[2]{0}', space=sflag, size = 0x8, scoped, tag = 'scoped memory for tpu_custom_call.1']
    #allocation5 [shape = 'u8[65536]{0}', space=vmem, size = 0x10000, scoped, tag = 'output window, operand 0']
    %10 = vsyncpa [#allocation3], 0
    %s11 = scalar_lea.sflag [#allocation3], 1
    %12 = vsyncpa %s11, 0
    %13 = vsyncpa [#allocation4], 0
    %s14 = scalar_lea.sflag [#allocation4], 1
    %15 = vsyncpa %s14, 0
    loop: start=0, step=1, limit=4
    $region2: #{tpu_custom_call.1} parent=1 // loop_pre_header
      _
    $region3: #{tpu_custom_call.1} parent=1 // loop_header
      %s17 = sphi 0, %s21
      %p18 = scmp.ge.s32.totalorder %s17, 4
      %s27 = sphi 0, %s29
      %s30 = sphi 0, %s27
      %s31 = sphi 0, %s30
      %s47 = sphi 0, %s31
      %s51 = sphi 0, %s51
      %s53 = sphi 0, %s51
      %s54 = sphi 0, %s53
      %s68 = sphi 0, %s54
      %s72 = sphi 0, %s72
      %s74 = sphi 0, %s72
      %s75 = sphi 0, %s74
      %s89 = sphi 0, %s75
      %s93 = sphi 0, %s93
      %s95 = sphi 0, %s93
      %s96 = sphi 0, %s95
      %s110 = sphi 0, %s96
      %s114 = sphi 0, %s114
      %s116 = sphi 0, %s114
      %s117 = sphi 0, %s116
      %s131 = sphi 0, %s117
      %s137 = sphi 0, %s139
      %s140 = sphi 0, %s137
      %s141 = sphi 0, %s140
      %s157 = sphi 0, %s141
    $region4: #{tpu_custom_call.1} parent=1 // loop_header_branch
      %20 = sbr.rel (%p18) target = $region8
    $region5: #{tpu_custom_call.1} parent=1 // loop_body
      %s22 = ssub.s32 %s17, 1
      %s23 = ssub.s32 %s17, 2
      %s24 = sadd.s32 %s17, 1
      %s25 = ssub.s32 %s17, %s24
      %p26 = scmp.eq.s32.totalorder %s25, 0
      %s28 = sadd.s32 %s27, 1
      %s29 = scalar_select %p26, %s27, %s28
      %p32 = pneg %p26
      %p33 = scmp.eq.s32.totalorder %s17, 1
      %p34 = por %p32, %p33
      %p35 = scmp.ne.s32.totalorder %s27, %s30
      %p36 = scmp.eq.s32.totalorder %s17, 0
      %p37 = por %p35, %p36
      %p38 = scmp.ne.s32.totalorder %s27, %s30
      %p39 = scmp.eq.s32.totalorder %s22, 1
      %p40 = por %p38, %p39
      %p41 = scmp.ne.s32.totalorder %s30, %s31
      %p42 = scmp.eq.s32.totalorder %s22, 0
      %p43 = por %p41, %p42
      %p44 = scmp.ne.s32.totalorder %s30, %s31
      %p45 = scmp.eq.s32.totalorder %s23, 1
      %p46 = por %p44, %p45
      %p48 = scmp.ne.s32.totalorder %s31, %s47
      %p49 = scmp.eq.s32.totalorder %s23, 0
      %p50 = por %p48, %p49
      %s52 = sadd.s32 %s51, 1
      %p55 = scmp.eq.s32.totalorder %s17, 1
      %p56 = scmp.ne.s32.totalorder %s51, %s53
      %p57 = scmp.eq.s32.totalorder %s17, 0
      %p58 = por %p56, %p57
      %p59 = scmp.ne.s32.totalorder %s51, %s53
      %p60 = scmp.eq.s32.totalorder %s22, 1
      %p61 = por %p59, %p60
      %p62 = scmp.ne.s32.totalorder %s53, %s54
      %p63 = scmp.eq.s32.totalorder %s22, 0
      %p64 = por %p62, %p63
      %p65 = scmp.ne.s32.totalorder %s53, %s54
      %p66 = scmp.eq.s32.totalorder %s23, 1
      %p67 = por %p65, %p66
      %p69 = scmp.ne.s32.totalorder %s54, %s68
      %p70 = scmp.eq.s32.totalorder %s23, 0
      %p71 = por %p69, %p70
      %s73 = sadd.s32 %s72, 1
      %p76 = scmp.eq.s32.totalorder %s17, 1
      %p77 = scmp.ne.s32.totalorder %s72, %s74
      %p78 = scmp.eq.s32.totalorder %s17, 0
      %p79 = por %p77, %p78
      %p80 = scmp.ne.s32.totalorder %s72, %s74
      %p81 = scmp.eq.s32.totalorder %s22, 1
      %p82 = por %p80, %p81
      %p83 = scmp.ne.s32.totalorder %s74, %s75
      %p84 = scmp.eq.s32.totalorder %s22, 0
      %p85 = por %p83, %p84
      %p86 = scmp.ne.s32.totalorder %s74, %s75
      %p87 = scmp.eq.s32.totalorder %s23, 1
      %p88 = por %p86, %p87
      %p90 = scmp.ne.s32.totalorder %s75, %s89
      %p91 = scmp.eq.s32.totalorder %s23, 0
      %p92 = por %p90, %p91
      %s94 = sadd.s32 %s93, 1
      %p97 = scmp.eq.s32.totalorder %s17, 1
      %p98 = scmp.ne.s32.totalorder %s93, %s95
      %p99 = scmp.eq.s32.totalorder %s17, 0
      %p100 = por %p98, %p99
      %p101 = scmp.ne.s32.totalorder %s93, %s95
      %p102 = scmp.eq.s32.totalorder %s22, 1
      %p103 = por %p101, %p102
      %p104 = scmp.ne.s32.totalorder %s95, %s96
      %p105 = scmp.eq.s32.totalorder %s22, 0
      %p106 = por %p104, %p105
      %p107 = scmp.ne.s32.totalorder %s95, %s96
      %p108 = scmp.eq.s32.totalorder %s23, 1
      %p109 = por %p107, %p108
      %p111 = scmp.ne.s32.totalorder %s96, %s110
      %p112 = scmp.eq.s32.totalorder %s23, 0
      %p113 = por %p111, %p112
      %s115 = sadd.s32 %s114, 1
      %p118 = scmp.eq.s32.totalorder %s17, 1
      %p119 = scmp.ne.s32.totalorder %s114, %s116
      %p120 = scmp.eq.s32.totalorder %s17, 0
      %p121 = por %p119, %p120
      %p122 = scmp.ne.s32.totalorder %s114, %s116
      %p123 = scmp.eq.s32.totalorder %s22, 1
      %p124 = por %p122, %p123
      %p125 = scmp.ne.s32.totalorder %s116, %s117
      %p126 = scmp.eq.s32.totalorder %s22, 0
      %p127 = por %p125, %p126
      %p128 = scmp.ne.s32.totalorder %s116, %s117
      %p129 = scmp.eq.s32.totalorder %s23, 1
      %p130 = por %p128, %p129
      %p132 = scmp.ne.s32.totalorder %s117, %s131
      %p133 = scmp.eq.s32.totalorder %s23, 0
      %p134 = por %p132, %p133
      %s135 = ssub.s32 %s17, %s24
      %p136 = scmp.eq.s32.totalorder %s135, 0
      %s138 = sadd.s32 %s137, 1
      %s139 = scalar_select %p136, %s137, %s138
      %p142 = pneg %p136
      %p143 = scmp.eq.s32.totalorder %s17, 1
      %p144 = por %p142, %p143
      %p145 = scmp.ne.s32.totalorder %s137, %s140
      %p146 = scmp.eq.s32.totalorder %s17, 0
      %p147 = por %p145, %p146
      %p148 = scmp.ne.s32.totalorder %s137, %s140
      %p149 = scmp.eq.s32.totalorder %s22, 1
      %p150 = por %p148, %p149
      %p151 = scmp.ne.s32.totalorder %s140, %s141
      %p152 = scmp.eq.s32.totalorder %s22, 0
      %p153 = por %p151, %p152
      %p154 = scmp.ne.s32.totalorder %s140, %s141
      %p155 = scmp.eq.s32.totalorder %s23, 1
      %p156 = por %p154, %p155
      %p158 = scmp.ne.s32.totalorder %s141, %s157
      %p159 = scmp.eq.s32.totalorder %s23, 0
      %p160 = por %p158, %p159
      %p161 = scmp.le.s32.totalorder 1, %s17
      %p162 = scmp.lt.s32.totalorder %s17, 3
      %p163 = pnand %p161, %p162
      %p164 = pneg %p163
      // Predicated region
      $region9: #{tpu_custom_call.1} parent=5 // pred_check
        _
      $region10: #{tpu_custom_call.1} parent=5 // pred_check_branch
        %166 = sbr.rel (%p163) target = $region12
      $region11: #{tpu_custom_call.1} parent=5 // pred_region
        %s167 = ssub.s32 %s17, 1
        // Predicated region
        $region13: #{tpu_custom_call.1} parent=11 // pred_check
          %p168 = pneg %p64
        $region14: #{tpu_custom_call.1} parent=11 // pred_check_branch
          %170 = sbr.rel (%p168) target = $region16
        $region15: #{tpu_custom_call.1} parent=11 // pred_region
          _
        $region16: #{tpu_custom_call.1} parent=11 // pred_fallthru
          _
        // Predicated region
        $region17: #{tpu_custom_call.1} parent=11 // pred_check
          %p171 = pneg %p85
        $region18: #{tpu_custom_call.1} parent=11 // pred_check_branch
          %173 = sbr.rel (%p171) target = $region20
        $region19: #{tpu_custom_call.1} parent=11 // pred_region
          _
        $region20: #{tpu_custom_call.1} parent=11 // pred_fallthru
          _
        // Predicated region
        $region21: #{tpu_custom_call.1} parent=11 // pred_check
          %p174 = pneg %p106
        $region22: #{tpu_custom_call.1} parent=11 // pred_check_branch
          %176 = sbr.rel (%p174) target = $region24
        $region23: #{tpu_custom_call.1} parent=11 // pred_region
          _
        $region24: #{tpu_custom_call.1} parent=11 // pred_fallthru
          _
        // Predicated region
        $region25: #{tpu_custom_call.1} parent=11 // pred_check
          %p177 = pneg %p127
        $region26: #{tpu_custom_call.1} parent=11 // pred_check_branch
          %179 = sbr.rel (%p177) target = $region28
        $region27: #{tpu_custom_call.1} parent=11 // pred_region
          _
        $region28: #{tpu_custom_call.1} parent=11 // pred_fallthru
          _
      $region12: #{tpu_custom_call.1} parent=5 // pred_fallthru
        _
      %p180 = scmp.lt.s32.totalorder %s17, 2
      // Predicated region
      $region29: #{tpu_custom_call.1} parent=5 // pred_check
        %p181 = pneg %p180
      $region30: #{tpu_custom_call.1} parent=5 // pred_check_branch
        %183 = sbr.rel (%p181) target = $region32
      $region31: #{tpu_custom_call.1} parent=5 // pred_region
        // Predicated region
        $region33: #{tpu_custom_call.1} parent=31 // pred_check
          %p184 = pneg %p37
        $region34: #{tpu_custom_call.1} parent=31 // pred_check_branch
          %186 = sbr.rel (%p184) target = $region36
        $region35: #{tpu_custom_call.1} parent=31 // pred_region
          %s187 = sand.u32 %s27, 1
          %s188 = scalar_lea.sflag [#allocation3], %s187
          %s189 = sand.u32 %s27, 1
          %s190 = smul.addr %s189, 128
          %s191 = scalar_lea.vmem [#allocation2], %s190
          %s192 = smul.u32 8, %s17
          %s194 = ssub.s32 2048, 2048
          %195 = vsyncadd %s188, %s194
          %s196 = smul.addr %s192, 2
          %s197 = smul.addr %s196, 128
          %s198 = scalar_lea.hbm %s0, %s197
          %s199 = sshll.u32 %s191, 4
          %s200 = int_to_ptr.vmem [resolvable:$true] %s199
          %205 = dma.hbm_to_vmem [thread:$0]  %s198, 2048, %s200, %s188, 128, 128, 8
        $region36: #{tpu_custom_call.1} parent=31 // pred_fallthru
          _
      $region32: #{tpu_custom_call.1} parent=5 // pred_fallthru
        _
      %p206 = scmp.le.s32.totalorder 1, %s17
      %p207 = scmp.lt.s32.totalorder %s17, 3
      %p208 = pnand %p206, %p207
      %p209 = pneg %p208
      // Predicated region
      $region37: #{tpu_custom_call.1} parent=5 // pred_check
        _
      $region38: #{tpu_custom_call.1} parent=5 // pred_check_branch
        %211 = sbr.rel (%p208) target = $region40
      $region39: #{tpu_custom_call.1} parent=5 // pred_region
        %s212 = ssub.s32 %s17, 1
        %s213 = sand.u32 %s30, 1
        %s214 = scalar_lea.sflag [#allocation3], %s213
        %s215 = sand.u32 %s30, 1
        %s216 = smul.addr %s215, 128
        %s217 = scalar_lea.vmem [#allocation2], %s216
        // Predicated region
        $region41: #{tpu_custom_call.1} parent=39 // pred_check
          %p218 = pneg %p43
        $region42: #{tpu_custom_call.1} parent=39 // pred_check_branch
          %220 = sbr.rel (%p218) target = $region44
        $region43: #{tpu_custom_call.1} parent=39 // pred_region
          %221 = dma.done %s214, 2048
        $region44: #{tpu_custom_call.1} parent=39 // pred_fallthru
          _
        %s222 = sand.u32 %s30, 1
        %s223 = scalar_lea.sflag [#allocation3], %s222
        %s224 = sand.u32 %s30, 1
        %s225 = smul.addr %s224, 128
        %s226 = scalar_lea.vmem [#allocation2], %s225
        %p227 = pneg %p43
        %p228 = pneg %p40
        %p229 = pneg %p64
        %p230 = pneg %p61
        %p231 = pneg %p85
        %p232 = pneg %p82
        %p233 = pneg %p106
        %p234 = pneg %p103
        %p235 = pneg %p127
        %p236 = pneg %p124
        %p237 = pneg %p153
        %p238 = pneg %p150
        %s239 = sand.u32 %s140, 1
        %s240 = scalar_lea.sflag [#allocation4], %s239
        %s241 = sand.u32 %s140, 1
        %s242 = smul.addr %s241, 64
        %s243 = scalar_lea.vmem [#allocation5], %s242
        %s244 = smul.u32 8, %s22
        %s245 = smul.u32 8, %s22
        %v246 = vld [vmem:[%s217] sm:$0xff]
        %v247 = vld [vmem:[%s217 + $0x8] sm:$0xff]
        %v248 = vld [vmem:[%s217 + $0x10] sm:$0xff]
        %v249 = vld [vmem:[%s217 + $0x18] sm:$0xff]
        %v250 = vld [vmem:[%s217 + $0x20] sm:$0xff]
        %v251 = vld [vmem:[%s217 + $0x28] sm:$0xff]
        %v252 = vld [vmem:[%s217 + $0x30] sm:$0xff]
        %v253 = vld [vmem:[%s217 + $0x38] sm:$0xff]
        %v254 = vld [vmem:[%s217 + $0x40] sm:$0xff]
        %v255 = vld [vmem:[%s217 + $0x48] sm:$0xff]
        %v256 = vld [vmem:[%s217 + $0x50] sm:$0xff]
        %v257 = vld [vmem:[%s217 + $0x58] sm:$0xff]
        %v258 = vld [vmem:[%s217 + $0x60] sm:$0xff]
        %v259 = vld [vmem:[%s217 + $0x68] sm:$0xff]
        %v260 = vld [vmem:[%s217 + $0x70] sm:$0xff]
        %v261 = vld [vmem:[%s217 + $0x78] sm:$0xff]
        %270 = vrot.lane.b32.xlu0 %v247, 64
        %v271 = vpop.permute.xlu0 %270
        %272 = vrot.lane.b32.xlu0 %v249, 64
        %v273 = vpop.permute.xlu0 %272
        %274 = vrot.lane.b32.xlu0 %v251, 64
        %v275 = vpop.permute.xlu0 %274
        %276 = vrot.lane.b32.xlu0 %v253, 64
        %v277 = vpop.permute.xlu0 %276
        %278 = vrot.lane.b32.xlu0 %v255, 64
        %v279 = vpop.permute.xlu0 %278
        %280 = vrot.lane.b32.xlu0 %v257, 64
        %v281 = vpop.permute.xlu0 %280
        %282 = vrot.lane.b32.xlu0 %v259, 64
        %v283 = vpop.permute.xlu0 %282
        %284 = vrot.lane.b32.xlu0 %v261, 64
        %v285 = vpop.permute.xlu0 %284
        %vm294 = vcmask 523264
        %v295 = vsel %vm294, %v246, %v271
        %v296 = vsel %vm294, %v248, %v273
        %v297 = vsel %vm294, %v250, %v275
        %v298 = vsel %vm294, %v252, %v277
        %v299 = vsel %vm294, %v254, %v279
        %v300 = vsel %vm294, %v256, %v281
        %v301 = vsel %vm294, %v258, %v283
        %v302 = vsel %vm294, %v260, %v285
        %303 = vadd.xlane.f32.xlu0 %v295
        %v304 = vpop.xlane.xlu0 %303
        %305 = vadd.xlane.f32.xlu0 %v296
        %v306 = vpop.xlane.xlu0 %305
        %307 = vadd.xlane.f32.xlu0 %v297
        %v308 = vpop.xlane.xlu0 %307
        %309 = vadd.xlane.f32.xlu0 %v298
        %v310 = vpop.xlane.xlu0 %309
        %311 = vadd.xlane.f32.xlu0 %v299
        %v312 = vpop.xlane.xlu0 %311
        %313 = vadd.xlane.f32.xlu0 %v300
        %v314 = vpop.xlane.xlu0 %313
        %315 = vadd.xlane.f32.xlu0 %v301
        %v316 = vpop.xlane.xlu0 %315
        %317 = vadd.xlane.f32.xlu0 %v302
        %v318 = vpop.xlane.xlu0 %317
        %v319 = vrcp.pop 128.0
        %v320 = vmul.f32 %v304, %v319
        %v321 = vmul.f32 %v306, %v319
        %v322 = vmul.f32 %v308, %v319
        %v323 = vmul.f32 %v310, %v319
        %v324 = vmul.f32 %v312, %v319
        %v325 = vmul.f32 %v314, %v319
        %v326 = vmul.f32 %v316, %v319
        %v327 = vmul.f32 %v318, %v319
        %v328 = vsub.f32 %v295, %v320
        %v329 = vsub.f32 %v296, %v321
        %v330 = vsub.f32 %v297, %v322
        %v331 = vsub.f32 %v298, %v323
        %v332 = vsub.f32 %v299, %v324
        %v333 = vsub.f32 %v300, %v325
        %v334 = vsub.f32 %v301, %v326
        %v335 = vsub.f32 %v302, %v327
        %v336 = vmul.f32 %v328, %v328
        %v337 = vmul.f32 %v329, %v329
        %v338 = vmul.f32 %v330, %v330
        %v339 = vmul.f32 %v331, %v331
        %v340 = vmul.f32 %v332, %v332
        %v341 = vmul.f32 %v333, %v333
        %v342 = vmul.f32 %v334, %v334
        %v343 = vmul.f32 %v335, %v335
        %344 = vadd.xlane.f32.xlu0 %v336
        %v345 = vpop.xlane.xlu0 %344
        %346 = vadd.xlane.f32.xlu0 %v337
        %v347 = vpop.xlane.xlu0 %346
        %348 = vadd.xlane.f32.xlu0 %v338
        %v349 = vpop.xlane.xlu0 %348
        %350 = vadd.xlane.f32.xlu0 %v339
        %v351 = vpop.xlane.xlu0 %350
        %352 = vadd.xlane.f32.xlu0 %v340
        %v353 = vpop.xlane.xlu0 %352
        %354 = vadd.xlane.f32.xlu0 %v341
        %v355 = vpop.xlane.xlu0 %354
        %356 = vadd.xlane.f32.xlu0 %v342
        %v357 = vpop.xlane.xlu0 %356
        %358 = vadd.xlane.f32.xlu0 %v343
        %v359 = vpop.xlane.xlu0 %358
        %v360 = vmul.f32 %v345, %v319
        %v361 = vmul.f32 %v347, %v319
        %v362 = vmul.f32 %v349, %v319
        %v363 = vmul.f32 %v351, %v319
        %v364 = vmul.f32 %v353, %v319
        %v365 = vmul.f32 %v355, %v319
        %v366 = vmul.f32 %v357, %v319
        %v367 = vmul.f32 %v359, %v319
        %v368 = vadd.f32 %v360, 1e-05
        %v369 = vadd.f32 %v361, 1e-05
        %v370 = vadd.f32 %v362, 1e-05
        %v371 = vadd.f32 %v363, 1e-05
        %v372 = vadd.f32 %v364, 1e-05
        %v373 = vadd.f32 %v365, 1e-05
        %v374 = vadd.f32 %v366, 1e-05
        %v375 = vadd.f32 %v367, 1e-05
        %v376 = vrsqrt.pop %v368
        %v377 = vrsqrt.pop %v369
        %v378 = vrsqrt.pop %v370
        %v379 = vrsqrt.pop %v371
        %v380 = vrsqrt.pop %v372
        %v381 = vrsqrt.pop %v373
        %v382 = vrsqrt.pop %v374
        %v383 = vrsqrt.pop %v375
        %v384 = vmul.f32 %v328, %v376
        %v385 = vmul.f32 %v329, %v377
        %v386 = vmul.f32 %v330, %v378
        %v387 = vmul.f32 %v331, %v379
        %v388 = vmul.f32 %v332, %v380
        %v389 = vmul.f32 %v333, %v381
        %v390 = vmul.f32 %v334, %v382
        %v391 = vmul.f32 %v335, %v383
        %v392 = vld [vmem:[%s1] sm:$0x1]
        %v394 = vlaneseq
        %v395 = vshrl.u32 %v394, 7
        %v396 = vsub.s32 0, %v395
        %v397 = vrot.slane %v392, %v396
        %v399 = vmul.f32 %v384, %v397
        %v400 = vmul.f32 %v385, %v397
        %v401 = vmul.f32 %v386, %v397
        %v402 = vmul.f32 %v387, %v397
        %v403 = vmul.f32 %v388, %v397
        %v404 = vmul.f32 %v389, %v397
        %v405 = vmul.f32 %v390, %v397
        %v406 = vmul.f32 %v391, %v397
        %v407 = vld [vmem:[%s2] sm:$0x1]
        %v409 = vlaneseq
        %v410 = vshrl.u32 %v409, 7
        %v411 = vsub.s32 0, %v410
        %v412 = vrot.slane %v407, %v411
        %v414 = vadd.f32 %v399, %v412
        %v415 = vadd.f32 %v400, %v412
        %v416 = vadd.f32 %v401, %v412
        %v417 = vadd.f32 %v402, %v412
        %v418 = vadd.f32 %v403, %v412
        %v419 = vadd.f32 %v404, %v412
        %v420 = vadd.f32 %v405, %v412
        %v421 = vadd.f32 %v406, %v412
        %v422 = vld [vmem:[%s3] sm:$0xff]
        %v423 = vld [vmem:[%s3 + $0x8] sm:$0xff]
        %v424 = vld [vmem:[%s3 + $0x10] sm:$0xff]
        %v425 = vld [vmem:[%s3 + $0x18] sm:$0xff]
        %v426 = vld [vmem:[%s3 + $0x20] sm:$0xff]
        %v427 = vld [vmem:[%s3 + $0x28] sm:$0xff]
        %v428 = vld [vmem:[%s3 + $0x30] sm:$0xff]
        %v429 = vld [vmem:[%s3 + $0x38] sm:$0xff]
        %v430 = vld [vmem:[%s3 + $0x40] sm:$0xff]
        %v431 = vld [vmem:[%s3 + $0x48] sm:$0xff]
        %v432 = vld [vmem:[%s3 + $0x50] sm:$0xff]
        %v433 = vld [vmem:[%s3 + $0x58] sm:$0xff]
        %v434 = vld [vmem:[%s3 + $0x60] sm:$0xff]
        %v435 = vld [vmem:[%s3 + $0x68] sm:$0xff]
        %v436 = vld [vmem:[%s3 + $0x70] sm:$0xff]
        %v437 = vld [vmem:[%s3 + $0x78] sm:$0xff]
        %v438 = vld [vmem:[%s4] sm:$0x1]
        %v440 = vlaneseq
        %v441 = vshrl.u32 %v440, 7
        %v442 = vsub.s32 0, %v441
        %v443 = vrot.slane %v438, %v442
        %445 = vmatprep.subr.mxu0 0.0
        %v446 = vand.u32 %v437, 4294901760
        %447 = vmatpush1.msra.mxu0 %v446
        %448 = vmatprep.subr.mxu0 0.0
        %v449 = vand.u32 %v436, 4294901760
        %450 = vmatpush1.msra.mxu0 %v449
        %451 = vmatprep.subr.mxu0 0.0
        %v452 = vand.u32 %v435, 4294901760
        %453 = vmatpush1.msra.mxu0 %v452
        %454 = vmatprep.subr.mxu0 0.0
        %v455 = vand.u32 %v434, 4294901760
        %456 = vmatpush1.msra.mxu0 %v455
        %457 = vmatprep.subr.mxu0 0.0
        %v458 = vand.u32 %v433, 4294901760
        %459 = vmatpush1.msra.mxu0 %v458
        %460 = vmatprep.subr.mxu0 0.0
        %v461 = vand.u32 %v432, 4294901760
        %462 = vmatpush1.msra.mxu0 %v461
        %463 = vmatprep.subr.mxu0 0.0
        %v464 = vand.u32 %v431, 4294901760
        %465 = vmatpush1.msra.mxu0 %v464
        %466 = vmatprep.subr.mxu0 0.0
        %v467 = vand.u32 %v430, 4294901760
        %468 = vmatpush1.msra.mxu0 %v467
        %469 = vmatprep.subr.mxu0 0.0
        %v470 = vand.u32 %v429, 4294901760
        %471 = vmatpush1.msra.mxu0 %v470
        %472 = vmatprep.subr.mxu0 0.0
        %v473 = vand.u32 %v428, 4294901760
        %474 = vmatpush1.msra.mxu0 %v473
        %475 = vmatprep.subr.mxu0 0.0
        %v476 = vand.u32 %v427, 4294901760
        %477 = vmatpush1.msra.mxu0 %v476
        %478 = vmatprep.subr.mxu0 0.0
        %v479 = vand.u32 %v426, 4294901760
        %480 = vmatpush1.msra.mxu0 %v479
        %481 = vmatprep.subr.mxu0 0.0
        %v482 = vand.u32 %v425, 4294901760
        %483 = vmatpush1.msra.mxu0 %v482
        %484 = vmatprep.subr.mxu0 0.0
        %v485 = vand.u32 %v424, 4294901760
        %486 = vmatpush1.msra.mxu0 %v485
        %487 = vmatprep.subr.mxu0 0.0
        %v488 = vand.u32 %v423, 4294901760
        %489 = vmatpush1.msra.mxu0 %v488
        %490 = vmatprep.subr.mxu0 0.0
        %v491 = vand.u32 %v422, 4294901760
        %492 = vmatpush1.msra.mxu0 %v491
        %493 = vmatprep.subr.mxu0 0.0
        %494 = vmatpush2.msra.mxu0 0.0
        %495 = vmatprep.subr.mxu0 0.0
        %496 = vmatpush2.msra.mxu0 0.0
        %497 = vmatprep.subr.mxu0 0.0
        %498 = vmatpush2.msra.mxu0 0.0
        %499 = vmatprep.subr.mxu0 0.0
        %500 = vmatpush2.msra.mxu0 0.0
        %501 = vmatprep.subr.mxu0 0.0
        %502 = vmatpush2.msra.mxu0 0.0
        %503 = vmatprep.subr.mxu0 0.0
        %504 = vmatpush2.msra.mxu0 0.0
        %505 = vmatprep.subr.mxu0 0.0
        %506 = vmatpush2.msra.mxu0 0.0
        %507 = vmatprep.subr.mxu0 0.0
        %508 = vmatpush2.msra.mxu0 0.0
        %509 = vmatprep.subr.mxu0 0.0
        %510 = vmatpush2.msra.mxu0 0.0
        %511 = vmatprep.subr.mxu0 0.0
        %512 = vmatpush2.msra.mxu0 0.0
        %513 = vmatprep.subr.mxu0 0.0
        %514 = vmatpush2.msra.mxu0 0.0
        %515 = vmatprep.subr.mxu0 0.0
        %516 = vmatpush2.msra.mxu0 0.0
        %517 = vmatprep.subr.mxu0 0.0
        %518 = vmatpush2.msra.mxu0 0.0
        %519 = vmatprep.subr.mxu0 0.0
        %520 = vmatpush2.msra.mxu0 0.0
        %521 = vmatprep.subr.mxu0 0.0
        %522 = vmatpush2.msra.mxu0 0.0
        %523 = vmatprep.subr.mxu0 0.0
        %524 = vmatpush2.msra.mxu0 0.0
        %525 = vmatprep.mubr.f32.mxu0 0.0
        %v526 = vand.u32 %v414, 4294901760
        %v527 = vsub.f32 %v414, %v526
        %v528 = vand.u32 %v527, 4294901760
        %v529 = vsub.f32 %v527, %v528
        %v530 = vand.u32 %v529, 4294901760
        %531 = vmatmul.mubr.f32.gmra.mxu0 %v530
        %v532 = vpop.f32.mrf.mxu0
        %v533 = vadd.f32 %v443, %v532
        %v534 = vpop.f32.mrf.mxu0
        %535 = vmatprep.mubr.f32.mxu0 0.0
        %v536 = vand.u32 %v415, 4294901760
        %v537 = vsub.f32 %v415, %v536
        %v538 = vand.u32 %v537, 4294901760
        %v539 = vsub.f32 %v537, %v538
        %v540 = vand.u32 %v539, 4294901760
        %541 = vmatmul.mubr.f32.gmra.mxu0 %v540
        %v542 = vpop.f32.mrf.mxu0
        %v543 = vadd.f32 %v443, %v542
        %v544 = vpop.f32.mrf.mxu0
        %545 = vmatprep.mubr.f32.mxu0 0.0
        %v546 = vand.u32 %v416, 4294901760
        %v547 = vsub.f32 %v416, %v546
        %v548 = vand.u32 %v547, 4294901760
        %v549 = vsub.f32 %v547, %v548
        %v550 = vand.u32 %v549, 4294901760
        %551 = vmatmul.mubr.f32.gmra.mxu0 %v550
        %v552 = vpop.f32.mrf.mxu0
        %v553 = vadd.f32 %v443, %v552
        %v554 = vpop.f32.mrf.mxu0
        %555 = vmatprep.mubr.f32.mxu0 0.0
        %v556 = vand.u32 %v417, 4294901760
        %v557 = vsub.f32 %v417, %v556
        %v558 = vand.u32 %v557, 4294901760
        %v559 = vsub.f32 %v557, %v558
        %v560 = vand.u32 %v559, 4294901760
        %561 = vmatmul.mubr.f32.gmra.mxu0 %v560
        %v562 = vpop.f32.mrf.mxu0
        %v563 = vadd.f32 %v443, %v562
        %v564 = vpop.f32.mrf.mxu0
        %565 = vmatprep.mubr.f32.mxu0 0.0
        %v566 = vand.u32 %v418, 4294901760
        %v567 = vsub.f32 %v418, %v566
        %v568 = vand.u32 %v567, 4294901760
        %v569 = vsub.f32 %v567, %v568
        %v570 = vand.u32 %v569, 4294901760
        %571 = vmatmul.mubr.f32.gmra.mxu0 %v570
        %v572 = vpop.f32.mrf.mxu0
        %v573 = vadd.f32 %v443, %v572
        %v574 = vpop.f32.mrf.mxu0
        %575 = vmatprep.mubr.f32.mxu0 0.0
        %v576 = vand.u32 %v419, 4294901760
        %v577 = vsub.f32 %v419, %v576
        %v578 = vand.u32 %v577, 4294901760
        %v579 = vsub.f32 %v577, %v578
        %v580 = vand.u32 %v579, 4294901760
        %581 = vmatmul.mubr.f32.gmra.mxu0 %v580
        %v582 = vpop.f32.mrf.mxu0
        %v583 = vadd.f32 %v443, %v582
        %v584 = vpop.f32.mrf.mxu0
        %585 = vmatprep.mubr.f32.mxu0 0.0
        %v586 = vand.u32 %v420, 4294901760
        %v587 = vsub.f32 %v420, %v586
        %v588 = vand.u32 %v587, 4294901760
        %v589 = vsub.f32 %v587, %v588
        %v590 = vand.u32 %v589, 4294901760
        %591 = vmatmul.mubr.f32.gmra.mxu0 %v590
        %v592 = vpop.f32.mrf.mxu0
        %v593 = vadd.f32 %v443, %v592
        %v594 = vpop.f32.mrf.mxu0
        %595 = vmatprep.mubr.f32.mxu0 0.0
        %v596 = vand.u32 %v421, 4294901760
        %v597 = vsub.f32 %v421, %v596
        %v598 = vand.u32 %v597, 4294901760
        %v599 = vsub.f32 %v597, %v598
        %v600 = vand.u32 %v599, 4294901760
        %601 = vmatmul.mubr.f32.gmra.mxu0 %v600
        %v602 = vpop.f32.mrf.mxu0
        %v603 = vadd.f32 %v443, %v602
        %v604 = vpop.f32.mrf.mxu0
        %605 = vdwg.mxu0
        %606 = vmatprep.subr.mxu0 0.0
        %v607 = vand.u32 %v437, 4294901760
        %v608 = vsub.f32 %v437, %v607
        %v609 = vand.u32 %v608, 4294901760
        %v610 = vsub.f32 %v608, %v609
        %v611 = vand.u32 %v610, 4294901760
        %612 = vmatpush1.msra.mxu0 %v611
        %613 = vmatprep.subr.mxu0 0.0
        %v614 = vand.u32 %v436, 4294901760
        %v615 = vsub.f32 %v436, %v614
        %v616 = vand.u32 %v615, 4294901760
        %v617 = vsub.f32 %v615, %v616
        %v618 = vand.u32 %v617, 4294901760
        %619 = vmatpush1.msra.mxu0 %v618
        %620 = vmatprep.subr.mxu0 0.0
        %v621 = vand.u32 %v435, 4294901760
        %v622 = vsub.f32 %v435, %v621
        %v623 = vand.u32 %v622, 4294901760
        %v624 = vsub.f32 %v622, %v623
        %v625 = vand.u32 %v624, 4294901760
        %626 = vmatpush1.msra.mxu0 %v625
        %627 = vmatprep.subr.mxu0 0.0
        %v628 = vand.u32 %v434, 4294901760
        %v629 = vsub.f32 %v434, %v628
        %v630 = vand.u32 %v629, 4294901760
        %v631 = vsub.f32 %v629, %v630
        %v632 = vand.u32 %v631, 4294901760
        %633 = vmatpush1.msra.mxu0 %v632
        %634 = vmatprep.subr.mxu0 0.0
        %v635 = vand.u32 %v433, 4294901760
        %v636 = vsub.f32 %v433, %v635
        %v637 = vand.u32 %v636, 4294901760
        %v638 = vsub.f32 %v636, %v637
        %v639 = vand.u32 %v638, 4294901760
        %640 = vmatpush1.msra.mxu0 %v639
        %641 = vmatprep.subr.mxu0 0.0
        %v642 = vand.u32 %v432, 4294901760
        %v643 = vsub.f32 %v432, %v642
        %v644 = vand.u32 %v643, 4294901760
        %v645 = vsub.f32 %v643, %v644
        %v646 = vand.u32 %v645, 4294901760
        %647 = vmatpush1.msra.mxu0 %v646
        %648 = vmatprep.subr.mxu0 0.0
        %v649 = vand.u32 %v431, 4294901760
        %v650 = vsub.f32 %v431, %v649
        %v651 = vand.u32 %v650, 4294901760
        %v652 = vsub.f32 %v650, %v651
        %v653 = vand.u32 %v652, 4294901760
        %654 = vmatpush1.msra.mxu0 %v653
        %655 = vmatprep.subr.mxu0 0.0
        %v656 = vand.u32 %v430, 4294901760
        %v657 = vsub.f32 %v430, %v656
        %v658 = vand.u32 %v657, 4294901760
        %v659 = vsub.f32 %v657, %v658
        %v660 = vand.u32 %v659, 4294901760
        %661 = vmatpush1.msra.mxu0 %v660
        %662 = vmatprep.subr.mxu0 0.0
        %v663 = vand.u32 %v429, 4294901760
        %v664 = vsub.f32 %v429, %v663
        %v665 = vand.u32 %v664, 4294901760
        %v666 = vsub.f32 %v664, %v665
        %v667 = vand.u32 %v666, 4294901760
        %668 = vmatpush1.msra.mxu0 %v667
        %669 = vmatprep.subr.mxu0 0.0
        %v670 = vand.u32 %v428, 4294901760
        %v671 = vsub.f32 %v428, %v670
        %v672 = vand.u32 %v671, 4294901760
        %v673 = vsub.f32 %v671, %v672
        %v674 = vand.u32 %v673, 4294901760
        %675 = vmatpush1.msra.mxu0 %v674
        %676 = vmatprep.subr.mxu0 0.0
        %v677 = vand.u32 %v427, 4294901760
        %v678 = vsub.f32 %v427, %v677
        %v679 = vand.u32 %v678, 4294901760
        %v680 = vsub.f32 %v678, %v679
        %v681 = vand.u32 %v680, 4294901760
        %682 = vmatpush1.msra.mxu0 %v681
        %683 = vmatprep.subr.mxu0 0.0
        %v684 = vand.u32 %v426, 4294901760
        %v685 = vsub.f32 %v426, %v684
        %v686 = vand.u32 %v685, 4294901760
        %v687 = vsub.f32 %v685, %v686
        %v688 = vand.u32 %v687, 4294901760
        %689 = vmatpush1.msra.mxu0 %v688
        %690 = vmatprep.subr.mxu0 0.0
        %v691 = vand.u32 %v425, 4294901760
        %v692 = vsub.f32 %v425, %v691
        %v693 = vand.u32 %v692, 4294901760
        %v694 = vsub.f32 %v692, %v693
        %v695 = vand.u32 %v694, 4294901760
        %696 = vmatpush1.msra.mxu0 %v695
        %697 = vmatprep.subr.mxu0 0.0
        %v698 = vand.u32 %v424, 4294901760
        %v699 = vsub.f32 %v424, %v698
        %v700 = vand.u32 %v699, 4294901760
        %v701 = vsub.f32 %v699, %v700
        %v702 = vand.u32 %v701, 4294901760
        %703 = vmatpush1.msra.mxu0 %v702
        %704 = vmatprep.subr.mxu0 0.0
        %v705 = vand.u32 %v423, 4294901760
        %v706 = vsub.f32 %v423, %v705
        %v707 = vand.u32 %v706, 4294901760
        %v708 = vsub.f32 %v706, %v707
        %v709 = vand.u32 %v708, 4294901760
        %710 = vmatpush1.msra.mxu0 %v709
        %711 = vmatprep.subr.mxu0 0.0
        %v712 = vand.u32 %v422, 4294901760
        %v713 = vsub.f32 %v422, %v712
        %v714 = vand.u32 %v713, 4294901760
        %v715 = vsub.f32 %v713, %v714
        %v716 = vand.u32 %v715, 4294901760
        %717 = vmatpush1.msra.mxu0 %v716
        %718 = vmatprep.subr.mxu0 0.0
        %719 = vmatpush2.msra.mxu0 0.0
        %720 = vmatprep.subr.mxu0 0.0
        %721 = vmatpush2.msra.mxu0 0.0
        %722 = vmatprep.subr.mxu0 0.0
        %723 = vmatpush2.msra.mxu0 0.0
        %724 = vmatprep.subr.mxu0 0.0
        %725 = vmatpush2.msra.mxu0 0.0
        %726 = vmatprep.subr.mxu0 0.0
        %727 = vmatpush2.msra.mxu0 0.0
        %728 = vmatprep.subr.mxu0 0.0
        %729 = vmatpush2.msra.mxu0 0.0
        %730 = vmatprep.subr.mxu0 0.0
        %731 = vmatpush2.msra.mxu0 0.0
        %732 = vmatprep.subr.mxu0 0.0
        %733 = vmatpush2.msra.mxu0 0.0
        %734 = vmatprep.subr.mxu0 0.0
        %735 = vmatpush2.msra.mxu0 0.0
        %736 = vmatprep.subr.mxu0 0.0
        %737 = vmatpush2.msra.mxu0 0.0
        %738 = vmatprep.subr.mxu0 0.0
        %739 = vmatpush2.msra.mxu0 0.0
        %740 = vmatprep.subr.mxu0 0.0
        %741 = vmatpush2.msra.mxu0 0.0
        %742 = vmatprep.subr.mxu0 0.0
        %743 = vmatpush2.msra.mxu0 0.0
        %744 = vmatprep.subr.mxu0 0.0
        %745 = vmatpush2.msra.mxu0 0.0
        %746 = vmatprep.subr.mxu0 0.0
        %747 = vmatpush2.msra.mxu0 0.0
        %748 = vmatprep.subr.mxu0 0.0
        %749 = vmatpush2.msra.mxu0 0.0
        %750 = vmatprep.mubr.f32.mxu0 0.0
        %v751 = vand.u32 %v414, 4294901760
        %752 = vmatmul.mubr.f32.gmra.mxu0 %v751
        %v753 = vpop.f32.mrf.mxu0
        %v754 = vadd.f32 %v533, %v753
        %v755 = vpop.f32.mrf.mxu0
        %756 = vmatprep.mubr.f32.mxu0 0.0
        %v757 = vand.u32 %v415, 4294901760
        %758 = vmatmul.mubr.f32.gmra.mxu0 %v757
        %v759 = vpop.f32.mrf.mxu0
        %v760 = vadd.f32 %v543, %v759
        %v761 = vpop.f32.mrf.mxu0
        %762 = vmatprep.mubr.f32.mxu0 0.0
        %v763 = vand.u32 %v416, 4294901760
        %764 = vmatmul.mubr.f32.gmra.mxu0 %v763
        %v765 = vpop.f32.mrf.mxu0
        %v766 = vadd.f32 %v553, %v765
        %v767 = vpop.f32.mrf.mxu0
        %768 = vmatprep.mubr.f32.mxu0 0.0
        %v769 = vand.u32 %v417, 4294901760
        %770 = vmatmul.mubr.f32.gmra.mxu0 %v769
        %v771 = vpop.f32.mrf.mxu0
        %v772 = vadd.f32 %v563, %v771
        %v773 = vpop.f32.mrf.mxu0
        %774 = vmatprep.mubr.f32.mxu0 0.0
        %v775 = vand.u32 %v418, 4294901760
        %776 = vmatmul.mubr.f32.gmra.mxu0 %v775
        %v777 = vpop.f32.mrf.mxu0
        %v778 = vadd.f32 %v573, %v777
        %v779 = vpop.f32.mrf.mxu0
        %780 = vmatprep.mubr.f32.mxu0 0.0
        %v781 = vand.u32 %v419, 4294901760
        %782 = vmatmul.mubr.f32.gmra.mxu0 %v781
        %v783 = vpop.f32.mrf.mxu0
        %v784 = vadd.f32 %v583, %v783
        %v785 = vpop.f32.mrf.mxu0
        %786 = vmatprep.mubr.f32.mxu0 0.0
        %v787 = vand.u32 %v420, 4294901760
        %788 = vmatmul.mubr.f32.gmra.mxu0 %v787
        %v789 = vpop.f32.mrf.mxu0
        %v790 = vadd.f32 %v593, %v789
        %v791 = vpop.f32.mrf.mxu0
        %792 = vmatprep.mubr.f32.mxu0 0.0
        %v793 = vand.u32 %v421, 4294901760
        %794 = vmatmul.mubr.f32.gmra.mxu0 %v793
        %v795 = vpop.f32.mrf.mxu0
        %v796 = vadd.f32 %v603, %v795
        %v797 = vpop.f32.mrf.mxu0
        %798 = vdwg.mxu0
        %799 = vmatprep.subr.mxu0 0.0
        %v800 = vand.u32 %v437, 4294901760
        %v801 = vsub.f32 %v437, %v800
        %802 = vmatpush1.msra.mxu0 %v801
        %803 = vmatprep.subr.mxu0 0.0
        %v804 = vand.u32 %v436, 4294901760
        %v805 = vsub.f32 %v436, %v804
        %806 = vmatpush1.msra.mxu0 %v805
        %807 = vmatprep.subr.mxu0 0.0
        %v808 = vand.u32 %v435, 4294901760
        %v809 = vsub.f32 %v435, %v808
        %810 = vmatpush1.msra.mxu0 %v809
        %811 = vmatprep.subr.mxu0 0.0
        %v812 = vand.u32 %v434, 4294901760
        %v813 = vsub.f32 %v434, %v812
        %814 = vmatpush1.msra.mxu0 %v813
        %815 = vmatprep.subr.mxu0 0.0
        %v816 = vand.u32 %v433, 4294901760
        %v817 = vsub.f32 %v433, %v816
        %818 = vmatpush1.msra.mxu0 %v817
        %819 = vmatprep.subr.mxu0 0.0
        %v820 = vand.u32 %v432, 4294901760
        %v821 = vsub.f32 %v432, %v820
        %822 = vmatpush1.msra.mxu0 %v821
        %823 = vmatprep.subr.mxu0 0.0
        %v824 = vand.u32 %v431, 4294901760
        %v825 = vsub.f32 %v431, %v824
        %826 = vmatpush1.msra.mxu0 %v825
        %827 = vmatprep.subr.mxu0 0.0
        %v828 = vand.u32 %v430, 4294901760
        %v829 = vsub.f32 %v430, %v828
        %830 = vmatpush1.msra.mxu0 %v829
        %831 = vmatprep.subr.mxu0 0.0
        %v832 = vand.u32 %v429, 4294901760
        %v833 = vsub.f32 %v429, %v832
        %834 = vmatpush1.msra.mxu0 %v833
        %835 = vmatprep.subr.mxu0 0.0
        %v836 = vand.u32 %v428, 4294901760
        %v837 = vsub.f32 %v428, %v836
        %838 = vmatpush1.msra.mxu0 %v837
        %839 = vmatprep.subr.mxu0 0.0
        %v840 = vand.u32 %v427, 4294901760
        %v841 = vsub.f32 %v427, %v840
        %842 = vmatpush1.msra.mxu0 %v841
        %843 = vmatprep.subr.mxu0 0.0
        %v844 = vand.u32 %v426, 4294901760
        %v845 = vsub.f32 %v426, %v844
        %846 = vmatpush1.msra.mxu0 %v845
        %847 = vmatprep.subr.mxu0 0.0
        %v848 = vand.u32 %v425, 4294901760
        %v849 = vsub.f32 %v425, %v848
        %850 = vmatpush1.msra.mxu0 %v849
        %851 = vmatprep.subr.mxu0 0.0
        %v852 = vand.u32 %v424, 4294901760
        %v853 = vsub.f32 %v424, %v852
        %854 = vmatpush1.msra.mxu0 %v853
        %855 = vmatprep.subr.mxu0 0.0
        %v856 = vand.u32 %v423, 4294901760
        %v857 = vsub.f32 %v423, %v856
        %858 = vmatpush1.msra.mxu0 %v857
        %859 = vmatprep.subr.mxu0 0.0
        %v860 = vand.u32 %v422, 4294901760
        %v861 = vsub.f32 %v422, %v860
        %862 = vmatpush1.msra.mxu0 %v861
        %863 = vmatprep.subr.mxu0 0.0
        %864 = vmatpush2.msra.mxu0 0.0
        %865 = vmatprep.subr.mxu0 0.0
        %866 = vmatpush2.msra.mxu0 0.0
        %867 = vmatprep.subr.mxu0 0.0
        %868 = vmatpush2.msra.mxu0 0.0
        %869 = vmatprep.subr.mxu0 0.0
        %870 = vmatpush2.msra.mxu0 0.0
        %871 = vmatprep.subr.mxu0 0.0
        %872 = vmatpush2.msra.mxu0 0.0
        %873 = vmatprep.subr.mxu0 0.0
        %874 = vmatpush2.msra.mxu0 0.0
        %875 = vmatprep.subr.mxu0 0.0
        %876 = vmatpush2.msra.mxu0 0.0
        %877 = vmatprep.subr.mxu0 0.0
        %878 = vmatpush2.msra.mxu0 0.0
        %879 = vmatprep.subr.mxu0 0.0
        %880 = vmatpush2.msra.mxu0 0.0
        %881 = vmatprep.subr.mxu0 0.0
        %882 = vmatpush2.msra.mxu0 0.0
        %883 = vmatprep.subr.mxu0 0.0
        %884 = vmatpush2.msra.mxu0 0.0
        %885 = vmatprep.subr.mxu0 0.0
        %886 = vmatpush2.msra.mxu0 0.0
        %887 = vmatprep.subr.mxu0 0.0
        %888 = vmatpush2.msra.mxu0 0.0
        %889 = vmatprep.subr.mxu0 0.0
        %890 = vmatpush2.msra.mxu0 0.0
        %891 = vmatprep.subr.mxu0 0.0
        %892 = vmatpush2.msra.mxu0 0.0
        %893 = vmatprep.subr.mxu0 0.0
        %894 = vmatpush2.msra.mxu0 0.0
        %895 = vmatprep.mubr.f32.mxu0 0.0
        %v896 = vand.u32 %v414, 4294901760
        %v897 = vsub.f32 %v414, %v896
        %898 = vmatmul.mubr.f32.gmra.mxu0 %v897
        %v899 = vpop.f32.mrf.mxu0
        %v900 = vadd.f32 %v754, %v899
        %v901 = vpop.f32.mrf.mxu0
        %902 = vmatprep.mubr.f32.mxu0 0.0
        %v903 = vand.u32 %v415, 4294901760
        %v904 = vsub.f32 %v415, %v903
        %905 = vmatmul.mubr.f32.gmra.mxu0 %v904
        %v906 = vpop.f32.mrf.mxu0
        %v907 = vadd.f32 %v760, %v906
        %v908 = vpop.f32.mrf.mxu0
        %909 = vmatprep.mubr.f32.mxu0 0.0
        %v910 = vand.u32 %v416, 4294901760
        %v911 = vsub.f32 %v416, %v910
        %912 = vmatmul.mubr.f32.gmra.mxu0 %v911
        %v913 = vpop.f32.mrf.mxu0
        %v914 = vadd.f32 %v766, %v913
        %v915 = vpop.f32.mrf.mxu0
        %916 = vmatprep.mubr.f32.mxu0 0.0
        %v917 = vand.u32 %v417, 4294901760
        %v918 = vsub.f32 %v417, %v917
        %919 = vmatmul.mubr.f32.gmra.mxu0 %v918
        %v920 = vpop.f32.mrf.mxu0
        %v921 = vadd.f32 %v772, %v920
        %v922 = vpop.f32.mrf.mxu0
        %923 = vmatprep.mubr.f32.mxu0 0.0
        %v924 = vand.u32 %v418, 4294901760
        %v925 = vsub.f32 %v418, %v924
        %926 = vmatmul.mubr.f32.gmra.mxu0 %v925
        %v927 = vpop.f32.mrf.mxu0
        %v928 = vadd.f32 %v778, %v927
        %v929 = vpop.f32.mrf.mxu0
        %930 = vmatprep.mubr.f32.mxu0 0.0
        %v931 = vand.u32 %v419, 4294901760
        %v932 = vsub.f32 %v419, %v931
        %933 = vmatmul.mubr.f32.gmra.mxu0 %v932
        %v934 = vpop.f32.mrf.mxu0
        %v935 = vadd.f32 %v784, %v934
        %v936 = vpop.f32.mrf.mxu0
        %937 = vmatprep.mubr.f32.mxu0 0.0
        %v938 = vand.u32 %v420, 4294901760
        %v939 = vsub.f32 %v420, %v938
        %940 = vmatmul.mubr.f32.gmra.mxu0 %v939
        %v941 = vpop.f32.mrf.mxu0
        %v942 = vadd.f32 %v790, %v941
        %v943 = vpop.f32.mrf.mxu0
        %944 = vmatprep.mubr.f32.mxu0 0.0
        %v945 = vand.u32 %v421, 4294901760
        %v946 = vsub.f32 %v421, %v945
        %947 = vmatmul.mubr.f32.gmra.mxu0 %v946
        %v948 = vpop.f32.mrf.mxu0
        %v949 = vadd.f32 %v796, %v948
        %v950 = vpop.f32.mrf.mxu0
        %951 = vdwg.mxu0
        %952 = vmatprep.subr.mxu0 0.0
        %v953 = vand.u32 %v437, 4294901760
        %954 = vmatpush1.msra.mxu0 %v953
        %955 = vmatprep.subr.mxu0 0.0
        %v956 = vand.u32 %v436, 4294901760
        %957 = vmatpush1.msra.mxu0 %v956
        %958 = vmatprep.subr.mxu0 0.0
        %v959 = vand.u32 %v435, 4294901760
        %960 = vmatpush1.msra.mxu0 %v959
        %961 = vmatprep.subr.mxu0 0.0
        %v962 = vand.u32 %v434, 4294901760
        %963 = vmatpush1.msra.mxu0 %v962
        %964 = vmatprep.subr.mxu0 0.0
        %v965 = vand.u32 %v433, 4294901760
        %966 = vmatpush1.msra.mxu0 %v965
        %967 = vmatprep.subr.mxu0 0.0
        %v968 = vand.u32 %v432, 4294901760
        %969 = vmatpush1.msra.mxu0 %v968
        %970 = vmatprep.subr.mxu0 0.0
        %v971 = vand.u32 %v431, 4294901760
        %972 = vmatpush1.msra.mxu0 %v971
        %973 = vmatprep.subr.mxu0 0.0
        %v974 = vand.u32 %v430, 4294901760
        %975 = vmatpush1.msra.mxu0 %v974
        %976 = vmatprep.subr.mxu0 0.0
        %v977 = vand.u32 %v429, 4294901760
        %978 = vmatpush1.msra.mxu0 %v977
        %979 = vmatprep.subr.mxu0 0.0
        %v980 = vand.u32 %v428, 4294901760
        %981 = vmatpush1.msra.mxu0 %v980
        %982 = vmatprep.subr.mxu0 0.0
        %v983 = vand.u32 %v427, 4294901760
        %984 = vmatpush1.msra.mxu0 %v983
        %985 = vmatprep.subr.mxu0 0.0
        %v986 = vand.u32 %v426, 4294901760
        %987 = vmatpush1.msra.mxu0 %v986
        %988 = vmatprep.subr.mxu0 0.0
        %v989 = vand.u32 %v425, 4294901760
        %990 = vmatpush1.msra.mxu0 %v989
        %991 = vmatprep.subr.mxu0 0.0
        %v992 = vand.u32 %v424, 4294901760
        %993 = vmatpush1.msra.mxu0 %v992
        %994 = vmatprep.subr.mxu0 0.0
        %v995 = vand.u32 %v423, 4294901760
        %996 = vmatpush1.msra.mxu0 %v995
        %997 = vmatprep.subr.mxu0 0.0
        %v998 = vand.u32 %v422, 4294901760
        %999 = vmatpush1.msra.mxu0 %v998
        %1000 = vmatprep.subr.mxu0 0.0
        %1001 = vmatpush2.msra.mxu0 0.0
        %1002 = vmatprep.subr.mxu0 0.0
        %1003 = vmatpush2.msra.mxu0 0.0
        %1004 = vmatprep.subr.mxu0 0.0
        %1005 = vmatpush2.msra.mxu0 0.0
        %1006 = vmatprep.subr.mxu0 0.0
        %1007 = vmatpush2.msra.mxu0 0.0
        %1008 = vmatprep.subr.mxu0 0.0
        %1009 = vmatpush2.msra.mxu0 0.0
        %1010 = vmatprep.subr.mxu0 0.0
        %1011 = vmatpush2.msra.mxu0 0.0
        %1012 = vmatprep.subr.mxu0 0.0
        %1013 = vmatpush2.msra.mxu0 0.0
        %1014 = vmatprep.subr.mxu0 0.0
        %1015 = vmatpush2.msra.mxu0 0.0
        %1016 = vmatprep.subr.mxu0 0.0
        %1017 = vmatpush2.msra.mxu0 0.0
        %1018 = vmatprep.subr.mxu0 0.0
        %1019 = vmatpush2.msra.mxu0 0.0
        %1020 = vmatprep.subr.mxu0 0.0
        %1021 = vmatpush2.msra.mxu0 0.0
        %1022 = vmatprep.subr.mxu0 0.0
        %1023 = vmatpush2.msra.mxu0 0.0
        %1024 = vmatprep.subr.mxu0 0.0
        %1025 = vmatpush2.msra.mxu0 0.0
        %1026 = vmatprep.subr.mxu0 0.0
        %1027 = vmatpush2.msra.mxu0 0.0
        %1028 = vmatprep.subr.mxu0 0.0
        %1029 = vmatpush2.msra.mxu0 0.0
        %1030 = vmatprep.subr.mxu0 0.0
        %1031 = vmatpush2.msra.mxu0 0.0
        %1032 = vmatprep.mubr.f32.mxu0 0.0
        %v1033 = vand.u32 %v414, 4294901760
        %v1034 = vsub.f32 %v414, %v1033
        %v1035 = vand.u32 %v1034, 4294901760
        %1036 = vmatmul.mubr.f32.gmra.mxu0 %v1035
        %v1037 = vpop.f32.mrf.mxu0
        %v1038 = vadd.f32 %v900, %v1037
        %v1039 = vpop.f32.mrf.mxu0
        %1040 = vmatprep.mubr.f32.mxu0 0.0
        %v1041 = vand.u32 %v415, 4294901760
        %v1042 = vsub.f32 %v415, %v1041
        %v1043 = vand.u32 %v1042, 4294901760
        %1044 = vmatmul.mubr.f32.gmra.mxu0 %v1043
        %v1045 = vpop.f32.mrf.mxu0
        %v1046 = vadd.f32 %v907, %v1045
        %v1047 = vpop.f32.mrf.mxu0
        %1048 = vmatprep.mubr.f32.mxu0 0.0
        %v1049 = vand.u32 %v416, 4294901760
        %v1050 = vsub.f32 %v416, %v1049
        %v1051 = vand.u32 %v1050, 4294901760
        %1052 = vmatmul.mubr.f32.gmra.mxu0 %v1051
        %v1053 = vpop.f32.mrf.mxu0
        %v1054 = vadd.f32 %v914, %v1053
        %v1055 = vpop.f32.mrf.mxu0
        %1056 = vmatprep.mubr.f32.mxu0 0.0
        %v1057 = vand.u32 %v417, 4294901760
        %v1058 = vsub.f32 %v417, %v1057
        %v1059 = vand.u32 %v1058, 4294901760
        %1060 = vmatmul.mubr.f32.gmra.mxu0 %v1059
        %v1061 = vpop.f32.mrf.mxu0
        %v1062 = vadd.f32 %v921, %v1061
        %v1063 = vpop.f32.mrf.mxu0
        %1064 = vmatprep.mubr.f32.mxu0 0.0
        %v1065 = vand.u32 %v418, 4294901760
        %v1066 = vsub.f32 %v418, %v1065
        %v1067 = vand.u32 %v1066, 4294901760
        %1068 = vmatmul.mubr.f32.gmra.mxu0 %v1067
        %v1069 = vpop.f32.mrf.mxu0
        %v1070 = vadd.f32 %v928, %v1069
        %v1071 = vpop.f32.mrf.mxu0
        %1072 = vmatprep.mubr.f32.mxu0 0.0
        %v1073 = vand.u32 %v419, 4294901760
        %v1074 = vsub.f32 %v419, %v1073
        %v1075 = vand.u32 %v1074, 4294901760
        %1076 = vmatmul.mubr.f32.gmra.mxu0 %v1075
        %v1077 = vpop.f32.mrf.mxu0
        %v1078 = vadd.f32 %v935, %v1077
        %v1079 = vpop.f32.mrf.mxu0
        %1080 = vmatprep.mubr.f32.mxu0 0.0
        %v1081 = vand.u32 %v420, 4294901760
        %v1082 = vsub.f32 %v420, %v1081
        %v1083 = vand.u32 %v1082, 4294901760
        %1084 = vmatmul.mubr.f32.gmra.mxu0 %v1083
        %v1085 = vpop.f32.mrf.mxu0
        %v1086 = vadd.f32 %v942, %v1085
        %v1087 = vpop.f32.mrf.mxu0
        %1088 = vmatprep.mubr.f32.mxu0 0.0
        %v1089 = vand.u32 %v421, 4294901760
        %v1090 = vsub.f32 %v421, %v1089
        %v1091 = vand.u32 %v1090, 4294901760
        %1092 = vmatmul.mubr.f32.gmra.mxu0 %v1091
        %v1093 = vpop.f32.mrf.mxu0
        %v1094 = vadd.f32 %v949, %v1093
        %v1095 = vpop.f32.mrf.mxu0
        %1096 = vdwg.mxu0
        %1097 = vmatprep.subr.mxu0 0.0
        %v1098 = vand.u32 %v437, 4294901760
        %v1099 = vsub.f32 %v437, %v1098
        %v1100 = vand.u32 %v1099, 4294901760
        %1101 = vmatpush1.msra.mxu0 %v1100
        %1102 = vmatprep.subr.mxu0 0.0
        %v1103 = vand.u32 %v436, 4294901760
        %v1104 = vsub.f32 %v436, %v1103
        %v1105 = vand.u32 %v1104, 4294901760
        %1106 = vmatpush1.msra.mxu0 %v1105
        %1107 = vmatprep.subr.mxu0 0.0
        %v1108 = vand.u32 %v435, 4294901760
        %v1109 = vsub.f32 %v435, %v1108
        %v1110 = vand.u32 %v1109, 4294901760
        %1111 = vmatpush1.msra.mxu0 %v1110
        %1112 = vmatprep.subr.mxu0 0.0
        %v1113 = vand.u32 %v434, 4294901760
        %v1114 = vsub.f32 %v434, %v1113
        %v1115 = vand.u32 %v1114, 4294901760
        %1116 = vmatpush1.msra.mxu0 %v1115
        %1117 = vmatprep.subr.mxu0 0.0
        %v1118 = vand.u32 %v433, 4294901760
        %v1119 = vsub.f32 %v433, %v1118
        %v1120 = vand.u32 %v1119, 4294901760
        %1121 = vmatpush1.msra.mxu0 %v1120
        %1122 = vmatprep.subr.mxu0 0.0
        %v1123 = vand.u32 %v432, 4294901760
        %v1124 = vsub.f32 %v432, %v1123
        %v1125 = vand.u32 %v1124, 4294901760
        %1126 = vmatpush1.msra.mxu0 %v1125
        %1127 = vmatprep.subr.mxu0 0.0
        %v1128 = vand.u32 %v431, 4294901760
        %v1129 = vsub.f32 %v431, %v1128
        %v1130 = vand.u32 %v1129, 4294901760
        %1131 = vmatpush1.msra.mxu0 %v1130
        %1132 = vmatprep.subr.mxu0 0.0
        %v1133 = vand.u32 %v430, 4294901760
        %v1134 = vsub.f32 %v430, %v1133
        %v1135 = vand.u32 %v1134, 4294901760
        %1136 = vmatpush1.msra.mxu0 %v1135
        %1137 = vmatprep.subr.mxu0 0.0
        %v1138 = vand.u32 %v429, 4294901760
        %v1139 = vsub.f32 %v429, %v1138
        %v1140 = vand.u32 %v1139, 4294901760
        %1141 = vmatpush1.msra.mxu0 %v1140
        %1142 = vmatprep.subr.mxu0 0.0
        %v1143 = vand.u32 %v428, 4294901760
        %v1144 = vsub.f32 %v428, %v1143
        %v1145 = vand.u32 %v1144, 4294901760
        %1146 = vmatpush1.msra.mxu0 %v1145
        %1147 = vmatprep.subr.mxu0 0.0
        %v1148 = vand.u32 %v427, 4294901760
        %v1149 = vsub.f32 %v427, %v1148
        %v1150 = vand.u32 %v1149, 4294901760
        %1151 = vmatpush1.msra.mxu0 %v1150
        %1152 = vmatprep.subr.mxu0 0.0
        %v1153 = vand.u32 %v426, 4294901760
        %v1154 = vsub.f32 %v426, %v1153
        %v1155 = vand.u32 %v1154, 4294901760
        %1156 = vmatpush1.msra.mxu0 %v1155
        %1157 = vmatprep.subr.mxu0 0.0
        %v1158 = vand.u32 %v425, 4294901760
        %v1159 = vsub.f32 %v425, %v1158
        %v1160 = vand.u32 %v1159, 4294901760
        %1161 = vmatpush1.msra.mxu0 %v1160
        %1162 = vmatprep.subr.mxu0 0.0
        %v1163 = vand.u32 %v424, 4294901760
        %v1164 = vsub.f32 %v424, %v1163
        %v1165 = vand.u32 %v1164, 4294901760
        %1166 = vmatpush1.msra.mxu0 %v1165
        %1167 = vmatprep.subr.mxu0 0.0
        %v1168 = vand.u32 %v423, 4294901760
        %v1169 = vsub.f32 %v423, %v1168
        %v1170 = vand.u32 %v1169, 4294901760
        %1171 = vmatpush1.msra.mxu0 %v1170
        %1172 = vmatprep.subr.mxu0 0.0
        %v1173 = vand.u32 %v422, 4294901760
        %v1174 = vsub.f32 %v422, %v1173
        %v1175 = vand.u32 %v1174, 4294901760
        %1176 = vmatpush1.msra.mxu0 %v1175
        %1177 = vmatprep.subr.mxu0 0.0
        %1178 = vmatpush2.msra.mxu0 0.0
        %1179 = vmatprep.subr.mxu0 0.0
        %1180 = vmatpush2.msra.mxu0 0.0
        %1181 = vmatprep.subr.mxu0 0.0
        %1182 = vmatpush2.msra.mxu0 0.0
        %1183 = vmatprep.subr.mxu0 0.0
        %1184 = vmatpush2.msra.mxu0 0.0
        %1185 = vmatprep.subr.mxu0 0.0
        %1186 = vmatpush2.msra.mxu0 0.0
        %1187 = vmatprep.subr.mxu0 0.0
        %1188 = vmatpush2.msra.mxu0 0.0
        %1189 = vmatprep.subr.mxu0 0.0
        %1190 = vmatpush2.msra.mxu0 0.0
        %1191 = vmatprep.subr.mxu0 0.0
        %1192 = vmatpush2.msra.mxu0 0.0
        %1193 = vmatprep.subr.mxu0 0.0
        %1194 = vmatpush2.msra.mxu0 0.0
        %1195 = vmatprep.subr.mxu0 0.0
        %1196 = vmatpush2.msra.mxu0 0.0
        %1197 = vmatprep.subr.mxu0 0.0
        %1198 = vmatpush2.msra.mxu0 0.0
        %1199 = vmatprep.subr.mxu0 0.0
        %1200 = vmatpush2.msra.mxu0 0.0
        %1201 = vmatprep.subr.mxu0 0.0
        %1202 = vmatpush2.msra.mxu0 0.0
        %1203 = vmatprep.subr.mxu0 0.0
        %1204 = vmatpush2.msra.mxu0 0.0
        %1205 = vmatprep.subr.mxu0 0.0
        %1206 = vmatpush2.msra.mxu0 0.0
        %1207 = vmatprep.subr.mxu0 0.0
        %1208 = vmatpush2.msra.mxu0 0.0
        %1209 = vmatprep.mubr.f32.mxu0 0.0
        %v1210 = vand.u32 %v414, 4294901760
        %1211 = vmatmul.mubr.f32.gmra.mxu0 %v1210
        %v1212 = vpop.f32.mrf.mxu0
        %v1213 = vadd.f32 %v1038, %v1212
        %v1214 = vpop.f32.mrf.mxu0
        %1215 = vmatprep.mubr.f32.mxu0 0.0
        %v1216 = vand.u32 %v415, 4294901760
        %1217 = vmatmul.mubr.f32.gmra.mxu0 %v1216
        %v1218 = vpop.f32.mrf.mxu0
        %v1219 = vadd.f32 %v1046, %v1218
        %v1220 = vpop.f32.mrf.mxu0
        %1221 = vmatprep.mubr.f32.mxu0 0.0
        %v1222 = vand.u32 %v416, 4294901760
        %1223 = vmatmul.mubr.f32.gmra.mxu0 %v1222
        %v1224 = vpop.f32.mrf.mxu0
        %v1225 = vadd.f32 %v1054, %v1224
        %v1226 = vpop.f32.mrf.mxu0
        %1227 = vmatprep.mubr.f32.mxu0 0.0
        %v1228 = vand.u32 %v417, 4294901760
        %1229 = vmatmul.mubr.f32.gmra.mxu0 %v1228
        %v1230 = vpop.f32.mrf.mxu0
        %v1231 = vadd.f32 %v1062, %v1230
        %v1232 = vpop.f32.mrf.mxu0
        %1233 = vmatprep.mubr.f32.mxu0 0.0
        %v1234 = vand.u32 %v418, 4294901760
        %1235 = vmatmul.mubr.f32.gmra.mxu0 %v1234
        %v1236 = vpop.f32.mrf.mxu0
        %v1237 = vadd.f32 %v1070, %v1236
        %v1238 = vpop.f32.mrf.mxu0
        %1239 = vmatprep.mubr.f32.mxu0 0.0
        %v1240 = vand.u32 %v419, 4294901760
        %1241 = vmatmul.mubr.f32.gmra.mxu0 %v1240
        %v1242 = vpop.f32.mrf.mxu0
        %v1243 = vadd.f32 %v1078, %v1242
        %v1244 = vpop.f32.mrf.mxu0
        %1245 = vmatprep.mubr.f32.mxu0 0.0
        %v1246 = vand.u32 %v420, 4294901760
        %1247 = vmatmul.mubr.f32.gmra.mxu0 %v1246
        %v1248 = vpop.f32.mrf.mxu0
        %v1249 = vadd.f32 %v1086, %v1248
        %v1250 = vpop.f32.mrf.mxu0
        %1251 = vmatprep.mubr.f32.mxu0 0.0
        %v1252 = vand.u32 %v421, 4294901760
        %1253 = vmatmul.mubr.f32.gmra.mxu0 %v1252
        %v1254 = vpop.f32.mrf.mxu0
        %v1255 = vadd.f32 %v1094, %v1254
        %v1256 = vpop.f32.mrf.mxu0
        %1257 = vdwg.mxu0
        %1258 = vmatprep.subr.mxu0 0.0
        %v1259 = vand.u32 %v437, 4294901760
        %1260 = vmatpush1.msra.mxu0 %v1259
        %1261 = vmatprep.subr.mxu0 0.0
        %v1262 = vand.u32 %v436, 4294901760
        %1263 = vmatpush1.msra.mxu0 %v1262
        %1264 = vmatprep.subr.mxu0 0.0
        %v1265 = vand.u32 %v435, 4294901760
        %1266 = vmatpush1.msra.mxu0 %v1265
        %1267 = vmatprep.subr.mxu0 0.0
        %v1268 = vand.u32 %v434, 4294901760
        %1269 = vmatpush1.msra.mxu0 %v1268
        %1270 = vmatprep.subr.mxu0 0.0
        %v1271 = vand.u32 %v433, 4294901760
        %1272 = vmatpush1.msra.mxu0 %v1271
        %1273 = vmatprep.subr.mxu0 0.0
        %v1274 = vand.u32 %v432, 4294901760
        %1275 = vmatpush1.msra.mxu0 %v1274
        %1276 = vmatprep.subr.mxu0 0.0
        %v1277 = vand.u32 %v431, 4294901760
        %1278 = vmatpush1.msra.mxu0 %v1277
        %1279 = vmatprep.subr.mxu0 0.0
        %v1280 = vand.u32 %v430, 4294901760
        %1281 = vmatpush1.msra.mxu0 %v1280
        %1282 = vmatprep.subr.mxu0 0.0
        %v1283 = vand.u32 %v429, 4294901760
        %1284 = vmatpush1.msra.mxu0 %v1283
        %1285 = vmatprep.subr.mxu0 0.0
        %v1286 = vand.u32 %v428, 4294901760
        %1287 = vmatpush1.msra.mxu0 %v1286
        %1288 = vmatprep.subr.mxu0 0.0
        %v1289 = vand.u32 %v427, 4294901760
        %1290 = vmatpush1.msra.mxu0 %v1289
        %1291 = vmatprep.subr.mxu0 0.0
        %v1292 = vand.u32 %v426, 4294901760
        %1293 = vmatpush1.msra.mxu0 %v1292
        %1294 = vmatprep.subr.mxu0 0.0
        %v1295 = vand.u32 %v425, 4294901760
        %1296 = vmatpush1.msra.mxu0 %v1295
        %1297 = vmatprep.subr.mxu0 0.0
        %v1298 = vand.u32 %v424, 4294901760
        %1299 = vmatpush1.msra.mxu0 %v1298
        %1300 = vmatprep.subr.mxu0 0.0
        %v1301 = vand.u32 %v423, 4294901760
        %1302 = vmatpush1.msra.mxu0 %v1301
        %1303 = vmatprep.subr.mxu0 0.0
        %v1304 = vand.u32 %v422, 4294901760
        %1305 = vmatpush1.msra.mxu0 %v1304
        %1306 = vmatprep.subr.mxu0 0.0
        %1307 = vmatpush2.msra.mxu0 0.0
        %1308 = vmatprep.subr.mxu0 0.0
        %1309 = vmatpush2.msra.mxu0 0.0
        %1310 = vmatprep.subr.mxu0 0.0
        %1311 = vmatpush2.msra.mxu0 0.0
        %1312 = vmatprep.subr.mxu0 0.0
        %1313 = vmatpush2.msra.mxu0 0.0
        %1314 = vmatprep.subr.mxu0 0.0
        %1315 = vmatpush2.msra.mxu0 0.0
        %1316 = vmatprep.subr.mxu0 0.0
        %1317 = vmatpush2.msra.mxu0 0.0
        %1318 = vmatprep.subr.mxu0 0.0
        %1319 = vmatpush2.msra.mxu0 0.0
        %1320 = vmatprep.subr.mxu0 0.0
        %1321 = vmatpush2.msra.mxu0 0.0
        %1322 = vmatprep.subr.mxu0 0.0
        %1323 = vmatpush2.msra.mxu0 0.0
        %1324 = vmatprep.subr.mxu0 0.0
        %1325 = vmatpush2.msra.mxu0 0.0
        %1326 = vmatprep.subr.mxu0 0.0
        %1327 = vmatpush2.msra.mxu0 0.0
        %1328 = vmatprep.subr.mxu0 0.0
        %1329 = vmatpush2.msra.mxu0 0.0
        %1330 = vmatprep.subr.mxu0 0.0
        %1331 = vmatpush2.msra.mxu0 0.0
        %1332 = vmatprep.subr.mxu0 0.0
        %1333 = vmatpush2.msra.mxu0 0.0
        %1334 = vmatprep.subr.mxu0 0.0
        %1335 = vmatpush2.msra.mxu0 0.0
        %1336 = vmatprep.subr.mxu0 0.0
        %1337 = vmatpush2.msra.mxu0 0.0
        %1338 = vmatprep.mubr.f32.mxu0 0.0
        %v1339 = vand.u32 %v414, 4294901760
        %1340 = vmatmul.mubr.f32.gmra.mxu0 %v1339
        %v1341 = vpop.f32.mrf.mxu0
        %v1342 = vadd.f32 %v1213, %v1341
        %v1343 = vpop.f32.mrf.mxu0
        %1344 = vmatprep.mubr.f32.mxu0 0.0
        %v1345 = vand.u32 %v415, 4294901760
        %1346 = vmatmul.mubr.f32.gmra.mxu0 %v1345
        %v1347 = vpop.f32.mrf.mxu0
        %v1348 = vadd.f32 %v1219, %v1347
        %v1349 = vpop.f32.mrf.mxu0
        %1350 = vmatprep.mubr.f32.mxu0 0.0
        %v1351 = vand.u32 %v416, 4294901760
        %1352 = vmatmul.mubr.f32.gmra.mxu0 %v1351
        %v1353 = vpop.f32.mrf.mxu0
        %v1354 = vadd.f32 %v1225, %v1353
        %v1355 = vpop.f32.mrf.mxu0
        %1356 = vmatprep.mubr.f32.mxu0 0.0
        %v1357 = vand.u32 %v417, 4294901760
        %1358 = vmatmul.mubr.f32.gmra.mxu0 %v1357
        %v1359 = vpop.f32.mrf.mxu0
        %v1360 = vadd.f32 %v1231, %v1359
        %v1361 = vpop.f32.mrf.mxu0
        %1362 = vmatprep.mubr.f32.mxu0 0.0
        %v1363 = vand.u32 %v418, 4294901760
        %1364 = vmatmul.mubr.f32.gmra.mxu0 %v1363
        %v1365 = vpop.f32.mrf.mxu0
        %v1366 = vadd.f32 %v1237, %v1365
        %v1367 = vpop.f32.mrf.mxu0
        %1368 = vmatprep.mubr.f32.mxu0 0.0
        %v1369 = vand.u32 %v419, 4294901760
        %1370 = vmatmul.mubr.f32.gmra.mxu0 %v1369
        %v1371 = vpop.f32.mrf.mxu0
        %v1372 = vadd.f32 %v1243, %v1371
        %v1373 = vpop.f32.mrf.mxu0
        %1374 = vmatprep.mubr.f32.mxu0 0.0
        %v1375 = vand.u32 %v420, 4294901760
        %1376 = vmatmul.mubr.f32.gmra.mxu0 %v1375
        %v1377 = vpop.f32.mrf.mxu0
        %v1378 = vadd.f32 %v1249, %v1377
        %v1379 = vpop.f32.mrf.mxu0
        %1380 = vmatprep.mubr.f32.mxu0 0.0
        %v1381 = vand.u32 %v421, 4294901760
        %1382 = vmatmul.mubr.f32.gmra.mxu0 %v1381
        %v1383 = vpop.f32.mrf.mxu0
        %v1384 = vadd.f32 %v1255, %v1383
        %v1385 = vpop.f32.mrf.mxu0
        %1386 = vdwg.mxu0
        %1387 = vst.msk [vmem:[%s243] sm:$0xff] %vm294, %v1342
        %1388 = vst.msk [vmem:[%s243 + $0x8] sm:$0xff] %vm294, %v1348
        %1389 = vst.msk [vmem:[%s243 + $0x10] sm:$0xff] %vm294, %v1354
        %1390 = vst.msk [vmem:[%s243 + $0x18] sm:$0xff] %vm294, %v1360
        %1391 = vst.msk [vmem:[%s243 + $0x20] sm:$0xff] %vm294, %v1366
        %1392 = vst.msk [vmem:[%s243 + $0x28] sm:$0xff] %vm294, %v1372
        %1393 = vst.msk [vmem:[%s243 + $0x30] sm:$0xff] %vm294, %v1378
        %1394 = vst.msk [vmem:[%s243 + $0x38] sm:$0xff] %vm294, %v1384
        %s1395 = sand.u32 %s140, 1
        %s1396 = scalar_lea.sflag [#allocation4], %s1395
        %s1397 = sand.u32 %s140, 1
        %s1398 = smul.addr %s1397, 64
        %s1399 = scalar_lea.vmem [#allocation5], %s1398
        // Predicated region
        $region45: #{tpu_custom_call.1} parent=39 // pred_check
          %p1400 = pneg %p150
        $region46: #{tpu_custom_call.1} parent=39 // pred_check_branch
          %1402 = sbr.rel (%p1400) target = $region48
        $region47: #{tpu_custom_call.1} parent=39 // pred_region
          %s1403 = smul.u32 8, %s22
          %s1405 = ssub.s32 1024, 1024
          %1406 = vsyncadd %s1396, %s1405
          %s1407 = smul.addr %s1403, 128
          %s1408 = scalar_lea.hbm %s5, %s1407
          %s1409 = sshll.u32 %s1399, 4
          %s1410 = int_to_ptr.vmem [resolvable:$true] %s1409
          %1415 = dma.vmem_to_hbm [thread:$0]  %s1410, 1024, %s1408, %s1396, 128, 128, 8
        $region48: #{tpu_custom_call.1} parent=39 // pred_fallthru
          _
      $region40: #{tpu_custom_call.1} parent=5 // pred_fallthru
        _
      %p1416 = scmp.le.s32.totalorder 2, %s17
      // Predicated region
      $region49: #{tpu_custom_call.1} parent=5 // pred_check
        %p1417 = pneg %p1416
      $region50: #{tpu_custom_call.1} parent=5 // pred_check_branch
        %1419 = sbr.rel (%p1417) target = $region52
      $region51: #{tpu_custom_call.1} parent=5 // pred_region
        %s1420 = ssub.s32 %s17, 2
        // Predicated region
        $region53: #{tpu_custom_call.1} parent=51 // pred_check
          %p1421 = pneg %p156
        $region54: #{tpu_custom_call.1} parent=51 // pred_check_branch
          %1423 = sbr.rel (%p1421) target = $region56
        $region55: #{tpu_custom_call.1} parent=51 // pred_region
          %s1424 = sand.u32 %s141, 1
          %s1425 = scalar_lea.sflag [#allocation4], %s1424
          %s1426 = sand.u32 %s141, 1
          %s1427 = smul.addr %s1426, 64
          %s1428 = scalar_lea.vmem [#allocation5], %s1427
          %1429 = dma.done %s1425, 1024
        $region56: #{tpu_custom_call.1} parent=51 // pred_fallthru
          _
      $region52: #{tpu_custom_call.1} parent=5 // pred_fallthru
        _
    $region6: #{tpu_custom_call.1} parent=1 // loop_footer
      %s21 = sadd.s32 1, %s17
    $region7: #{tpu_custom_call.1} parent=1 // loop_footer_branch
      %16 = sbr.rel target = $region3
    $region8: #{tpu_custom_call.1} parent=1 // loop_exit
      _
    %1430 = vsyncpa [#allocation3], 1
    %s1431 = scalar_lea.sflag [#allocation3], 1
    %1432 = vsyncpa %s1431, 1
    %1433 = vsyncpa [#allocation4], 1
    %s1434 = scalar_lea.sflag [#allocation4], 1
    %1435 = vsyncpa %s1434, 1

</llo_original>
